<compile_context>
chip_gen: v6e
topology: v6e:2x2x1
jax: 0.10.0
libtpu: 0.0.40
codegen_flags: <defaults>
</compile_context>

<pallas_src>
import functools

import jax
import jax.numpy as jnp
from jax.experimental import pallas as pl
from jax.experimental.pallas import tpu as pltpu

_LANES = 128


def _vq_loss_kernel(x_ref, cb_ref, half_sqr_ref, loss_ref, *, beta):
    # x_ref:        [TB, D]  f32/bf16   (z_e_x tile, natural layout, pipelined)
    # cb_ref:       [Kp, D]  f32/bf16   (codebook, resident)
    # half_sqr_ref: [Kp, 1]  f32        (0.5*||e_k||^2, resident; padded rows huge)
    # loss_ref:     [1, TB]  f32        (lane-dense per-row loss)
    x = x_ref[...]
    cb = cb_ref[...]
    half_e = half_sqr_ref[...]

    # Cross term on the MXU, contracting D with D -> [Kp, TB]; batch rows land on
    # the lane axis (Mosaic handles the rhs relayout on the otherwise-idle XLU).
    cross = jax.lax.dot_general(
        cb, x, dimension_numbers=(((1,), (1,)), ((), ())),
        preferred_element_type=jnp.float32)

    # Single VPU op per element of the big [Kp, TB] tile.
    score = half_e - cross
    min_score = jnp.min(score, axis=0, keepdims=True)          # [1, TB]

    # ||x||^2 per batch row, produced directly lane-dense via a ones-row matmul.
    xf = x.astype(jnp.float32)
    xsq = xf * xf                                               # [TB, D]
    ones_row = jnp.ones((1, xsq.shape[1]), jnp.float32)
    x_sqr = jax.lax.dot_general(
        ones_row, xsq, dimension_numbers=(((1,), (1,)), ((), ())),
        preferred_element_type=jnp.float32)                     # [1, TB]

    # min_k dist = 2*min_k(0.5||e||^2 - e.x) + ||x||^2 ; clamp cancellation
    # negatives before sqrt.
    min_d = jnp.maximum(2.0 * min_score + x_sqr, 0.0)           # [1, TB]
    loss_ref[...] = (1.0 + beta) * jnp.sqrt(min_d)


def _plan_batch_tiling(B, block_b):
    """Pick (tb, num_tiles): tb a lane multiple (so output stores are lane-dense)
    and num_tiles >= 2 whenever the batch allows it (v7x has 2 TensorCores)."""
    if B <= _LANES:
        return B, 1                       # single tile == full batch
    block_b = max(_LANES, (block_b // _LANES) * _LANES)
    half = pl.cdiv(pl.cdiv(B, 2), _LANES) * _LANES
    tb = min(block_b, half)
    num_tiles = pl.cdiv(B, tb)
    return tb, num_tiles


def vq_embedding_forward(z_e_x, codebook, beta, *, block_b=4096):
    """Per-row loss = vq_loss + beta * commitment_loss, shape [B]."""
    B, D = z_e_x.shape
    K, D2 = codebook.shape
    assert D == D2

    # Stream bf16 as-is (halves HBM bytes of the dominant operand); else f32.
    if z_e_x.dtype == jnp.bfloat16:
        x = z_e_x
        cb = codebook.astype(jnp.bfloat16)
        sub = 16
    else:
        x = z_e_x.astype(jnp.float32)
        cb = codebook.astype(jnp.float32)
        sub = 8

    # Hoist 0.5*||e_k||^2 (always f32) out of the batch loop; pad K to a sublane
    # multiple with rows whose half-norm is huge so they never win the min.
    cb_f32 = codebook.astype(jnp.float32)
    half_sqr = 0.5 * jnp.sum(cb_f32 * cb_f32, axis=-1, keepdims=True)   # [K, 1]
    k_pad = pl.cdiv(K, sub) * sub
    if k_pad != K:
        cb = jnp.pad(cb, ((0, k_pad - K), (0, 0)))
        half_sqr = jnp.pad(half_sqr, ((0, k_pad - K), (0, 0)),
                           constant_values=1e30)

    tb, num_tiles = _plan_batch_tiling(B, block_b)
    b_out = num_tiles * tb   # padded output grid; input stays unpadded in HBM

    loss = pl.pallas_call(
        functools.partial(_vq_loss_kernel, beta=float(beta)),
        out_shape=jax.ShapeDtypeStruct((1, b_out), jnp.float32),
        grid_spec=pltpu.PrefetchScalarGridSpec(
            num_scalar_prefetch=0,
            grid=(num_tiles,),
            in_specs=[
                pl.BlockSpec((tb, D), lambda i: (i, 0)),      # z_e_x tile (pipelined)
                pl.BlockSpec((k_pad, D), lambda i: (0, 0)),   # codebook (resident)
                pl.BlockSpec((k_pad, 1), lambda i: (0, 0)),   # 0.5*||e||^2 (resident)
            ],
            out_specs=pl.BlockSpec((1, tb), lambda i: (0, i)),
        ),
        compiler_params=pltpu.CompilerParams(
            dimension_semantics=("parallel",),
            vmem_limit_bytes=48 * 1024 * 1024),
    )(x, cb, half_sqr)
    return loss[0, :B]


def _reference_forward(z_e_x, codebook, beta):
    # pure-JAX reference of the PyTorch forward
    dist = (jnp.sum(z_e_x ** 2, -1, keepdims=True)
            + jnp.sum(codebook ** 2, -1)[None, :]
            - 2.0 * z_e_x @ codebook.T)
    idx = jnp.argmin(dist, axis=-1)
    selected = codebook[idx]
    vq = jnp.linalg.norm(selected - z_e_x, axis=-1)
    cm = jnp.linalg.norm(z_e_x - selected, axis=-1)
    return vq + beta * cm


if __name__ == "__main__":
    # Module hyperparameters (synthetic, deterministic init)
    codebook_size = 32   # K
    code_size = 16       # D
    beta = 0.25
    batch = 8            # B

    key = jax.random.PRNGKey(0)
    k_cb, k_x, k_x2 = jax.random.split(key, 3)

    # nn.Embedding weight init: uniform(-1/codebook_size, 1/codebook_size)
    codebook = jax.random.uniform(
        k_cb, (codebook_size, code_size), dtype=jnp.float32,
        minval=-1.0 / codebook_size, maxval=1.0 / codebook_size)

    # encoder output z_e(x): [batch, code_size]
    z_e_x = jax.random.normal(k_x, (batch, code_size), dtype=jnp.float32) * 0.05

    loss = jax.block_until_ready(vq_embedding_forward(z_e_x, codebook, beta))
    ref = _reference_forward(z_e_x, codebook, beta)
    assert loss.shape == (batch,)
    assert jnp.allclose(loss, ref, atol=1e-4, rtol=1e-3), (loss, ref)

    # Multi-tile path: batch > 128, non-aligned -> 2 tiles, last tile reads OOB.
    big_batch = 1000
    z_big = jax.random.normal(k_x2, (big_batch, code_size), dtype=jnp.float32) * 0.05
    loss_big = jax.block_until_ready(
        vq_embedding_forward(z_big, codebook, beta, block_b=512))
    ref_big = _reference_forward(z_big, codebook, beta)
    assert loss_big.shape == (big_batch,)
    assert jnp.allclose(loss_big, ref_big, atol=1e-4, rtol=1e-3)

    # bf16 streaming path (dot accumulates in f32; loose tolerance vs f32 ref).
    z_bf16 = z_e_x.astype(jnp.bfloat16)
    loss_bf16 = jax.block_until_ready(vq_embedding_forward(z_bf16, codebook, beta))
    ref_bf16 = _reference_forward(z_bf16.astype(jnp.float32), codebook, beta)
    assert jnp.allclose(loss_bf16, ref_bf16, atol=5e-3, rtol=5e-2)

    print("KERNEL_OK")
</pallas_src>

<mosaic_0001>
module attributes {stable_mosaic.version = 11 : i64} {
  func.func @_vq_loss_kernel(%arg0: i32, %arg1: memref<8x16xf32, #tpu.memory_space<vmem>>, %arg2: memref<32x16xf32, #tpu.memory_space<vmem>>, %arg3: memref<32x1xf32, #tpu.memory_space<vmem>>, %arg4: memref<1x8xf32, #tpu.memory_space<vmem>>) attributes {dimension_semantics = [#tpu.dimension_semantics<parallel>], iteration_bounds = array<i64: 1>, scalar_prefetch = 0 : i64, scratch_operands = 0 : i64, tpu.core_type = #tpu.core_type<tc>, window_params = [{transform_indices = @transform_0, window_bounds = array<i64: 8, 16>}, {pipeline_mode = #tpu.pipeline_mode<synchronous>, transform_indices = @transform_1, window_bounds = array<i64: 32, 16>}, {pipeline_mode = #tpu.pipeline_mode<synchronous>, transform_indices = @transform_2, window_bounds = array<i64: 32, 1>}, {transform_indices = @transform_3, window_bounds = array<i64: 1, 8>}]} {
    %c0 = arith.constant 0 : index
    %c0_0 = arith.constant 0 : index
    %0 = vector.load %arg1[%c0, %c0_0] : memref<8x16xf32, #tpu.memory_space<vmem>>, vector<8x16xf32>
    %c0_1 = arith.constant 0 : index
    %c0_2 = arith.constant 0 : index
    %1 = vector.load %arg2[%c0_1, %c0_2] : memref<32x16xf32, #tpu.memory_space<vmem>>, vector<32x16xf32>
    %c0_3 = arith.constant 0 : index
    %c0_4 = arith.constant 0 : index
    %2 = vector.load %arg3[%c0_3, %c0_4] : memref<32x1xf32, #tpu.memory_space<vmem>>, vector<32x1xf32>
    %cst = arith.constant dense<0.000000e+00> : vector<32x8xf32>
    %3 = tpu.matmul %1, %0, %cst {dimension_numbers = #tpu.dot_dimension_numbers<[1], [1], [0], [0], [0, 0, 1, 0], [], []>} : vector<32x16xf32>, vector<8x16xf32>, vector<32x8xf32> -> vector<32x8xf32>
    %4 = vector.broadcast %2 : vector<32x1xf32> to vector<32x8xf32>
    %5 = arith.subf %4, %3 : vector<32x8xf32>
    %cst_5 = arith.constant dense<0x7F800000> : vector<8xf32>
    %6 = vector.multi_reduction <minimumf>, %5, %cst_5 [0] : vector<32x8xf32> to vector<8xf32>
    %7 = vector.shape_cast %6 : vector<8xf32> to vector<1x8xf32>
    %8 = arith.mulf %0, %0 : vector<8x16xf32>
    %cst_6 = arith.constant 1.000000e+00 : f32
    %9 = vector.broadcast %cst_6 : f32 to vector<1x16xf32>
    %cst_7 = arith.constant dense<0.000000e+00> : vector<1x8xf32>
    %10 = tpu.matmul %9, %8, %cst_7 {dimension_numbers = #tpu.dot_dimension_numbers<[1], [1], [0], [0], [0, 0, 1, 0], [], []>} : vector<1x16xf32>, vector<8x16xf32>, vector<1x8xf32> -> vector<1x8xf32>
    %cst_8 = arith.constant 2.000000e+00 : f32
    %11 = vector.broadcast %cst_8 : f32 to vector<1x8xf32>
    %12 = arith.mulf %11, %7 : vector<1x8xf32>
    %13 = arith.addf %12, %10 : vector<1x8xf32>
    %cst_9 = arith.constant 0.000000e+00 : f32
    %14 = vector.broadcast %cst_9 : f32 to vector<1x8xf32>
    %15 = arith.maximumf %13, %14 : vector<1x8xf32>
    %16 = math.sqrt %15 : vector<1x8xf32>
    %cst_10 = arith.constant 1.250000e+00 : f32
    %17 = vector.broadcast %cst_10 : f32 to vector<1x8xf32>
    %18 = arith.mulf %17, %16 : vector<1x8xf32>
    %c0_11 = arith.constant 0 : index
    %c0_12 = arith.constant 0 : index
    %19 = vector.load %arg4[%c0_11, %c0_12] : memref<1x8xf32, #tpu.memory_space<vmem>>, vector<1x8xf32>
    tpu.vector_store %arg4[%c0_11, %c0_12], %18 {strides = array<i32>} : memref<1x8xf32, #tpu.memory_space<vmem>>, vector<1x8xf32>,
    return
  }
  func.func @transform_0(%arg0: i32) -> (i32, i32) {
    %c0_i32 = arith.constant 0 : i32
    %c0_i32_0 = arith.constant 0 : i32
    return %arg0, %c0_i32 : i32, i32
  }
  func.func @transform_1(%arg0: i32) -> (i32, i32) {
    %c0_i32 = arith.constant 0 : i32
    %c0_i32_0 = arith.constant 0 : i32
    %c0_i32_1 = arith.constant 0 : i32
    return %c0_i32, %c0_i32_0 : i32, i32
  }
  func.func @transform_2(%arg0: i32) -> (i32, i32) {
    %c0_i32 = arith.constant 0 : i32
    %c0_i32_0 = arith.constant 0 : i32
    %c0_i32_1 = arith.constant 0 : i32
    return %c0_i32, %c0_i32_0 : i32, i32
  }
  func.func @transform_3(%arg0: i32) -> (i32, i32) {
    %c0_i32 = arith.constant 0 : i32
    %c0_i32_0 = arith.constant 0 : i32
    return %c0_i32, %arg0 : i32, i32
  }
}

</mosaic_0001>

<llo_original>
// kernel: tpu_custom_call.1
$region0: #{tpu_custom_call.1}
  #allocation0 [shape = 'u32[]', space=smem, size = 0x4, offset = 0x4, fixed_abs, tag = 'smem constant byte address 0x4 - core index']
  #allocation1 [shape = 'u32[144,128]{1,0:T(1,128)}', space=vmem, size = 0x12000, scoped, tag = 'internal scratch']
  %s0 = inlined_call_operand.vmem [shape: f32[8,16], index: 0, kind: input, shape index: {}]
  %s1 = inlined_call_operand.vmem [shape: f32[32,16], index: 1, kind: input, shape index: {}]
  %s2 = inlined_call_operand.vmem [shape: f32[32,1], index: 2, kind: input, shape index: {}]
  %s3 = inlined_call_operand.hbm [shape: f32[1,8], index: 3, kind: output, shape index: {}]
  %s4 = sld [smem:[#allocation0]]
  $region22: #{tpu_custom_call.1} parent=0
    _
  %s6 = ssub.s32 1, %s4
  %s7 = scalar_select 0, %s6, %s4
  $region1: #{tpu_custom_call.1} parent=0
    #allocation2 [shape = 'u8[512]{0}', space=vmem, size = 0x400, scoped, tag = 'output window, operand 0, single buffered']
    #allocation3 [shape = 's32[1]{0}', space=sflag, size = 0x4, scoped, tag = 'scoped memory for tpu_custom_call.1']
    %8 = vsyncpa [#allocation3], 0
    // Predicated region
    $region2: #{tpu_custom_call.1} parent=1 // pred_check
      _
    $region3: #{tpu_custom_call.1} parent=1 // pred_check_branch
      %10 = sbr.rel (0) target = $region5
    $region4: #{tpu_custom_call.1} parent=1 // pred_region
      _
    $region5: #{tpu_custom_call.1} parent=1 // pred_fallthru
      _
    // Predicated region
    $region6: #{tpu_custom_call.1} parent=1 // pred_check
      _
    $region7: #{tpu_custom_call.1} parent=1 // pred_check_branch
      %12 = sbr.rel (0) target = $region9
    $region8: #{tpu_custom_call.1} parent=1 // pred_region
      _
    $region9: #{tpu_custom_call.1} parent=1 // pred_fallthru
      _
    // Predicated region
    $region10: #{tpu_custom_call.1} parent=1 // pred_check
      _
    $region11: #{tpu_custom_call.1} parent=1 // pred_check_branch
      %14 = sbr.rel (0) target = $region13
    $region12: #{tpu_custom_call.1} parent=1 // pred_region
      _
    $region13: #{tpu_custom_call.1} parent=1 // pred_fallthru
      _
    %v15 = vld [vmem:[%s0] sm:$0xff]
    %v16 = vld [vmem:[%s1] sm:$0xff]
    %v17 = vld [vmem:[%s1 + $0x8] sm:$0xff]
    %v18 = vld [vmem:[%s1 + $0x10] sm:$0xff]
    %v19 = vld [vmem:[%s1 + $0x18] sm:$0xff]
    %v20 = vld [vmem:[%s2] sm:$0xff]
    %v21 = vld [vmem:[%s2 + $0x8] sm:$0xff]
    %v22 = vld [vmem:[%s2 + $0x10] sm:$0xff]
    %v23 = vld [vmem:[%s2 + $0x18] sm:$0xff]
    %vm24 = vcmask 130048
    %v26 = vsel %vm24, %v16, 0
    %v29 = vsel %vm24, %v17, 0
    %v32 = vsel %vm24, %v18, 0
    %v35 = vsel %vm24, %v19, 0
    %v38 = vsel %vm24, %v15, 0
    %40 = vmatprep.subr.mxu0 0.0
    %41 = vmatpush1.xpose.msra.mxu0 0.0
    %42 = vmatprep.subr.mxu0 0.0
    %43 = vmatpush1.xpose.msra.mxu0 0.0
    %44 = vmatprep.subr.mxu0 0.0
    %45 = vmatpush1.xpose.msra.mxu0 0.0
    %46 = vmatprep.subr.mxu0 0.0
    %47 = vmatpush1.xpose.msra.mxu0 0.0
    %48 = vmatprep.subr.mxu0 0.0
    %49 = vmatpush1.xpose.msra.mxu0 0.0
    %50 = vmatprep.subr.mxu0 0.0
    %51 = vmatpush1.xpose.msra.mxu0 0.0
    %52 = vmatprep.subr.mxu0 0.0
    %53 = vmatpush1.xpose.msra.mxu0 0.0
    %54 = vmatprep.subr.mxu0 0.0
    %55 = vmatpush1.xpose.msra.mxu0 0.0
    %56 = vmatprep.subr.mxu0 0.0
    %57 = vmatpush1.xpose.msra.mxu0 0.0
    %58 = vmatprep.subr.mxu0 0.0
    %59 = vmatpush1.xpose.msra.mxu0 0.0
    %60 = vmatprep.subr.mxu0 0.0
    %61 = vmatpush1.xpose.msra.mxu0 0.0
    %62 = vmatprep.subr.mxu0 0.0
    %63 = vmatpush1.xpose.msra.mxu0 0.0
    %64 = vmatprep.subr.mxu0 0.0
    %65 = vmatpush1.xpose.msra.mxu0 0.0
    %66 = vmatprep.subr.mxu0 0.0
    %67 = vmatpush1.xpose.msra.mxu0 0.0
    %68 = vmatprep.subr.mxu0 0.0
    %69 = vmatpush1.xpose.msra.mxu0 0.0
    %70 = vmatprep.subr.mxu0 0.0
    %71 = vmatpush1.xpose.msra.mxu0 %v38
    %72 = vmatprep.subr.mxu0 0.0
    %73 = vmatpush2.xpose.msra.mxu0 0.0
    %74 = vmatprep.subr.mxu0 0.0
    %75 = vmatpush2.xpose.msra.mxu0 0.0
    %76 = vmatprep.subr.mxu0 0.0
    %77 = vmatpush2.xpose.msra.mxu0 0.0
    %78 = vmatprep.subr.mxu0 0.0
    %79 = vmatpush2.xpose.msra.mxu0 0.0
    %80 = vmatprep.subr.mxu0 0.0
    %81 = vmatpush2.xpose.msra.mxu0 0.0
    %82 = vmatprep.subr.mxu0 0.0
    %83 = vmatpush2.xpose.msra.mxu0 0.0
    %84 = vmatprep.subr.mxu0 0.0
    %85 = vmatpush2.xpose.msra.mxu0 0.0
    %86 = vmatprep.subr.mxu0 0.0
    %87 = vmatpush2.xpose.msra.mxu0 0.0
    %88 = vmatprep.subr.mxu0 0.0
    %89 = vmatpush2.xpose.msra.mxu0 0.0
    %90 = vmatprep.subr.mxu0 0.0
    %91 = vmatpush2.xpose.msra.mxu0 0.0
    %92 = vmatprep.subr.mxu0 0.0
    %93 = vmatpush2.xpose.msra.mxu0 0.0
    %94 = vmatprep.subr.mxu0 0.0
    %95 = vmatpush2.xpose.msra.mxu0 0.0
    %96 = vmatprep.subr.mxu0 0.0
    %97 = vmatpush2.xpose.msra.mxu0 0.0
    %98 = vmatprep.subr.mxu0 0.0
    %99 = vmatpush2.xpose.msra.mxu0 0.0
    %100 = vmatprep.subr.mxu0 0.0
    %101 = vmatpush2.xpose.msra.mxu0 0.0
    %102 = vmatprep.subr.mxu0 0.0
    %103 = vmatpush2.xpose.msra.mxu0 0.0
    %104 = vmatprep.mubr.f32.mxu0 0.0
    %105 = vmatmul.mubr.f32.gmra.mxu0 %v26
    %v106 = vpop.f32.mrf.mxu0
    %v107 = vadd.f32 0.0, %v106
    %v108 = vpop.f32.mrf.mxu0
    %109 = vmatprep.mubr.f32.mxu0 0.0
    %110 = vmatmul.mubr.f32.gmra.mxu0 %v29
    %v111 = vpop.f32.mrf.mxu0
    %v112 = vadd.f32 0.0, %v111
    %v113 = vpop.f32.mrf.mxu0
    %114 = vmatprep.mubr.f32.mxu0 0.0
    %115 = vmatmul.mubr.f32.gmra.mxu0 %v32
    %v116 = vpop.f32.mrf.mxu0
    %v117 = vadd.f32 0.0, %v116
    %v118 = vpop.f32.mrf.mxu0
    %119 = vmatprep.mubr.f32.mxu0 0.0
    %120 = vmatmul.mubr.f32.gmra.mxu0 %v35
    %v121 = vpop.f32.mrf.mxu0
    %v122 = vadd.f32 0.0, %v121
    %v123 = vpop.f32.mrf.mxu0
    %124 = vdwg.mxu0
    %126 = vset.pattern.permute.xlu0 0
    %127 = vperm.xlu0 %126, %v20
    %v128 = vpop.permute.xlu0 %127
    %131 = vset.pattern.permute.xlu0 0
    %132 = vperm.xlu0 %131, %v21
    %v133 = vpop.permute.xlu0 %132
    %136 = vset.pattern.permute.xlu0 0
    %137 = vperm.xlu0 %136, %v22
    %v138 = vpop.permute.xlu0 %137
    %141 = vset.pattern.permute.xlu0 0
    %142 = vperm.xlu0 %141, %v23
    %v143 = vpop.permute.xlu0 %142
    %v145 = vsub.f32 %v128, %v107
    %v146 = vsub.f32 %v133, %v112
    %v147 = vsub.f32 %v138, %v117
    %v148 = vsub.f32 %v143, %v122
    %vm149 = vcmask 64512
    %v150 = vsel %vm149, %v145, inf
    %v151 = vsel %vm149, %v146, inf
    %v152 = vsel %vm149, %v147, inf
    %v153 = vsel %vm149, %v148, inf
    %v154 = vmin.f32 %v150, %v151
    %v155 = vmin.f32 %v152, %v153
    %v156 = vmin.f32 %v154, %v155
    %v157 = vrot.slane %v156, 4
    %v158 = vmin.f32 %v156, %v157
    %v159 = vrot.slane %v158, 2
    %v160 = vmin.f32 %v158, %v159
    %v161 = vrot.slane %v160, 1
    %v162 = vmin.f32 %v160, %v161
    %v163 = vmul.f32 %v15, %v15
    %v165 = vsel %vm24, 1.0, 0
    %v168 = vsel %vm24, %v163, 0
    %170 = vmatprep.subr.mxu0 0.0
    %171 = vmatpush1.xpose.msra.mxu0 0.0
    %172 = vmatprep.subr.mxu0 0.0
    %173 = vmatpush1.xpose.msra.mxu0 0.0
    %174 = vmatprep.subr.mxu0 0.0
    %175 = vmatpush1.xpose.msra.mxu0 0.0
    %176 = vmatprep.subr.mxu0 0.0
    %177 = vmatpush1.xpose.msra.mxu0 0.0
    %178 = vmatprep.subr.mxu0 0.0
    %179 = vmatpush1.xpose.msra.mxu0 0.0
    %180 = vmatprep.subr.mxu0 0.0
    %181 = vmatpush1.xpose.msra.mxu0 0.0
    %182 = vmatprep.subr.mxu0 0.0
    %183 = vmatpush1.xpose.msra.mxu0 0.0
    %184 = vmatprep.subr.mxu0 0.0
    %185 = vmatpush1.xpose.msra.mxu0 0.0
    %186 = vmatprep.subr.mxu0 0.0
    %187 = vmatpush1.xpose.msra.mxu0 0.0
    %188 = vmatprep.subr.mxu0 0.0
    %189 = vmatpush1.xpose.msra.mxu0 0.0
    %190 = vmatprep.subr.mxu0 0.0
    %191 = vmatpush1.xpose.msra.mxu0 0.0
    %192 = vmatprep.subr.mxu0 0.0
    %193 = vmatpush1.xpose.msra.mxu0 0.0
    %194 = vmatprep.subr.mxu0 0.0
    %195 = vmatpush1.xpose.msra.mxu0 0.0
    %196 = vmatprep.subr.mxu0 0.0
    %197 = vmatpush1.xpose.msra.mxu0 0.0
    %198 = vmatprep.subr.mxu0 0.0
    %199 = vmatpush1.xpose.msra.mxu0 0.0
    %200 = vmatprep.subr.mxu0 0.0
    %201 = vmatpush1.xpose.msra.mxu0 %v168
    %202 = vmatprep.subr.mxu0 0.0
    %203 = vmatpush2.xpose.msra.mxu0 0.0
    %204 = vmatprep.subr.mxu0 0.0
    %205 = vmatpush2.xpose.msra.mxu0 0.0
    %206 = vmatprep.subr.mxu0 0.0
    %207 = vmatpush2.xpose.msra.mxu0 0.0
    %208 = vmatprep.subr.mxu0 0.0
    %209 = vmatpush2.xpose.msra.mxu0 0.0
    %210 = vmatprep.subr.mxu0 0.0
    %211 = vmatpush2.xpose.msra.mxu0 0.0
    %212 = vmatprep.subr.mxu0 0.0
    %213 = vmatpush2.xpose.msra.mxu0 0.0
    %214 = vmatprep.subr.mxu0 0.0
    %215 = vmatpush2.xpose.msra.mxu0 0.0
    %216 = vmatprep.subr.mxu0 0.0
    %217 = vmatpush2.xpose.msra.mxu0 0.0
    %218 = vmatprep.subr.mxu0 0.0
    %219 = vmatpush2.xpose.msra.mxu0 0.0
    %220 = vmatprep.subr.mxu0 0.0
    %221 = vmatpush2.xpose.msra.mxu0 0.0
    %222 = vmatprep.subr.mxu0 0.0
    %223 = vmatpush2.xpose.msra.mxu0 0.0
    %224 = vmatprep.subr.mxu0 0.0
    %225 = vmatpush2.xpose.msra.mxu0 0.0
    %226 = vmatprep.subr.mxu0 0.0
    %227 = vmatpush2.xpose.msra.mxu0 0.0
    %228 = vmatprep.subr.mxu0 0.0
    %229 = vmatpush2.xpose.msra.mxu0 0.0
    %230 = vmatprep.subr.mxu0 0.0
    %231 = vmatpush2.xpose.msra.mxu0 0.0
    %232 = vmatprep.subr.mxu0 0.0
    %233 = vmatpush2.xpose.msra.mxu0 0.0
    %234 = vmatprep.mubr.f32.mxu0 0.0
    %235 = vmatmul.mubr.f32.gmra.mxu0 %v165
    %v236 = vpop.f32.mrf.mxu0
    %v237 = vadd.f32 0.0, %v236
    %v238 = vpop.f32.mrf.mxu0
    %239 = vdwg.mxu0
    %v240 = vmul.f32 %v162, 2.0
    %v241 = vadd.f32 %v240, %v237
    %v242 = vmax.f32 %v241, 0.0
    %v243 = vrsqrt.pop %v242
    %v244 = vmul.f32 %v242, %v243
    %vm245 = vcmp.eq.f32.partialorder %v242, inf
    %v246 = vsel %vm245, %v242, %v244
    %vm247 = vcmp.eq.f32.partialorder %v242, 0.0
    %v248 = vand.u32 %v242, 2147483648
    %v249 = vsel %vm247, %v248, %v246
    %v250 = vmul.f32 %v249, 1.25
    %vm251 = vcmask 57344
    %252 = vst.msk [vmem:[#allocation2] sm:$0x1] %vm251, %v250
    // Predicated region
    $region14: #{tpu_custom_call.1} parent=1 // pred_check
      _
    $region15: #{tpu_custom_call.1} parent=1 // pred_check_branch
      %254 = sbr.rel (0) target = $region17
    $region16: #{tpu_custom_call.1} parent=1 // pred_region
      %s256 = ssub.s32 16, 16
      %257 = vsyncadd [#allocation3], %s256
      %s259 = sshll.u32 [#allocation2], 4
      %s260 = int_to_ptr.vmem [resolvable:$true] %s259
      %262 = dma.vmem_to_hbm [thread:$0]  %s260, 16, %s3, [#allocation3]
    $region17: #{tpu_custom_call.1} parent=1 // pred_fallthru
      _
    // Predicated region
    $region18: #{tpu_custom_call.1} parent=1 // pred_check
      _
    $region19: #{tpu_custom_call.1} parent=1 // pred_check_branch
      %264 = sbr.rel (0) target = $region21
    $region20: #{tpu_custom_call.1} parent=1 // pred_region
      %265 = dma.done [#allocation3], 16
    $region21: #{tpu_custom_call.1} parent=1 // pred_fallthru
      _
    %266 = vsyncpa [#allocation3], 1

</llo_original>
